<compile_context>
chip_gen: v6e
topology: v6e:2x2x1
jax: 0.10.0
libtpu: 0.0.40
codegen_flags: <defaults>
</compile_context>

<pallas_src>
import functools

import jax
import jax.numpy as jnp
from jax.experimental import pallas as pl
from jax.experimental.pallas import tpu as pltpu


def _flash_sdpa_kernel(seed_ref, q_ref, k_ref, v_ref, o_ref,
                       m_sc, l_sc, acc_sc, *, dropout_p):
    ki = pl.program_id(2)
    n_k = pl.num_programs(2)

    # --- init online-softmax state on the first K block of each (batch, q) tile ---
    @pl.when(ki == 0)
    def _():
        m_sc[...] = jnp.full(m_sc.shape, -jnp.inf, dtype=m_sc.dtype)
        l_sc[...] = jnp.zeros(l_sc.shape, dtype=l_sc.dtype)
        acc_sc[...] = jnp.zeros(acc_sc.shape, dtype=acc_sc.dtype)

    q = q_ref[...]          # (Bt, bq, D)  bf16
    k = k_ref[...]          # (Bt, bk, D)  bf16  (per-key scale already folded in wrapper)
    v = v_ref[...]          # (Bt, bk, D)  bf16

    # Batched QK^T with the contraction over D expressed directly (no K transpose);
    # bf16 operands, f32 MXU accumulation.
    s = jnp.einsum("bqd,bkd->bqk", q, k,
                   preferred_element_type=jnp.float32)         # (Bt, bq, bk) f32

    # --- online softmax update ---
    m_prev = m_sc[...]
    m_new = jnp.maximum(m_prev, jnp.max(s, axis=-1, keepdims=True))
    alpha = jnp.exp(m_prev - m_new)
    p = jnp.exp(s - m_new)                                      # (Bt, bq, bk) f32

    # Denominator uses the *un-dropped* probabilities (softmax happens before dropout).
    l_sc[...] = alpha * l_sc[...] + jnp.sum(p, axis=-1, keepdims=True)
    m_sc[...] = m_new

    # --- dropout on the (unnormalized) probabilities ---
    if dropout_p > 0.0:
        bt, bq, bk = p.shape
        sq_total = pl.num_programs(1) * bq
        sk_total = n_k * bk
        # Global element coordinates in the full (B, S_q, S_k) tensor -> tiling-invariant.
        b_idx = jax.lax.broadcasted_iota(jnp.int32, p.shape, 0) + pl.program_id(0) * bt
        q_idx = jax.lax.broadcasted_iota(jnp.int32, p.shape, 1) + pl.program_id(1) * bq
        k_idx = jax.lax.broadcasted_iota(jnp.int32, p.shape, 2) + ki * bk
        cnt = ((b_idx * sq_total + q_idx) * sk_total + k_idx).astype(jnp.uint32)
        # murmur3-style finalizer (plain VPU integer ops; no pltpu.prng_* -> portable).
        x = cnt ^ seed_ref[0].astype(jnp.uint32)
        x = x * jnp.uint32(0x9E3779B1)
        x = x ^ (x >> 16)
        x = x * jnp.uint32(0x85EBCA6B)
        x = x ^ (x >> 13)
        x = x * jnp.uint32(0xC2B2AE35)
        x = x ^ (x >> 16)
        bits31 = (x >> 1).astype(jnp.int32)                     # uniform in [0, 2^31)
        thr = jnp.int32(min(int(dropout_p * (2.0 ** 31)), (1 << 31) - 1))
        p = jnp.where(bits31 >= thr, p, 0.0)                    # keep with prob (1 - p)

    # bf16 operands for the PV matmul; f32 accumulation on the MXU.
    acc_sc[...] = alpha * acc_sc[...] + jnp.einsum(
        "bqk,bkd->bqd", p.astype(jnp.bfloat16), v,
        preferred_element_type=jnp.float32)

    # --- epilogue: normalize the (Bt, bq, D) accumulator, not the S_q*S_k matrix ---
    @pl.when(ki == n_k - 1)
    def _():
        out = acc_sc[...] * pl.reciprocal(l_sc[...], approx=True)
        if dropout_p > 0.0:
            out = out * (1.0 / (1.0 - dropout_p))   # inverted-dropout rescale on S_q*D
        o_ref[...] = out.astype(o_ref.dtype)


def sdpa_pallas(query, key, value, scale_factor, dropout_p=0.0, seed=0,
                block_q=512, block_k=512, block_b=None):
    """query: (B,S_q,D) f32; key/value: (B,S_k,D) f32; scale_factor: (S_k,) per-key scale."""
    B, S_q, D = query.shape
    _, S_k, _ = key.shape
    dropout_p = float(dropout_p)

    if dropout_p >= 1.0:
        # PyTorch: everything dropped -> zeros (avoids the 1/(1-p)=inf rescale path).
        return jnp.zeros((B, S_q, D), dtype=query.dtype)

    # Fold the per-key scale into K once (an S_k*D pass) and cast Q/K/V to bf16:
    # halves HBM traffic for the streamed operands and runs QK^T at bf16 MXU rate.
    q_b = query.astype(jnp.bfloat16)
    k_b = (key * scale_factor.reshape(1, S_k, 1).astype(key.dtype)).astype(jnp.bfloat16)
    v_b = value.astype(jnp.bfloat16)

    block_q = min(block_q, S_q)
    block_k = min(block_k, S_k)
    if block_b is None:
        n_q = S_q // block_q
        # VMEM if we fold the whole batch into one block (f32 acc + double-buffered bf16 q/k/v).
        fold_bytes = B * block_q * D * 4 + 4 * B * (block_q + 2 * block_k) * D * 2
        truly_tiny = (B * S_q * S_k) <= (64 * 1024)   # per-step overhead dominates
        keeps_parallel = n_q >= 2                      # (b,q) grid keeps >=2 points (v7x 2 TCs)
        block_b = B if (fold_bytes <= (8 << 20) and (keeps_parallel or truly_tiny)) else 1
    # TODO(synk): no ragged handling; arbitrary S_q/S_k need padding wrapper-side.
    assert S_q % block_q == 0 and S_k % block_k == 0 and B % block_b == 0

    seed_arr = jnp.array([seed], dtype=jnp.int32)
    grid = (B // block_b, S_q // block_q, S_k // block_k)
    kernel = functools.partial(_flash_sdpa_kernel, dropout_p=dropout_p)

    return pl.pallas_call(
        kernel,
        out_shape=jax.ShapeDtypeStruct((B, S_q, D), query.dtype),
        grid_spec=pltpu.PrefetchScalarGridSpec(
            num_scalar_prefetch=1,                       # seed -> SMEM
            grid=grid,
            in_specs=[
                pl.BlockSpec((block_b, block_q, D), lambda b, qi, ki, seed: (b, qi, 0)),
                pl.BlockSpec((block_b, block_k, D), lambda b, qi, ki, seed: (b, ki, 0)),
                pl.BlockSpec((block_b, block_k, D), lambda b, qi, ki, seed: (b, ki, 0)),
            ],
            out_specs=pl.BlockSpec((block_b, block_q, D),
                                   lambda b, qi, ki, seed: (b, qi, 0)),
            scratch_shapes=[
                pltpu.VMEM((block_b, block_q, 1), jnp.float32),   # m: running max
                pltpu.VMEM((block_b, block_q, 1), jnp.float32),   # l: running denom
                pltpu.VMEM((block_b, block_q, D), jnp.float32),   # acc
            ],
        ),
        compiler_params=pltpu.CompilerParams(
            # batch & q-block axes are independent -> shard across cores;
            # k-block axis carries the online-softmax state -> arbitrary (serial).
            dimension_semantics=("parallel", "parallel", "arbitrary")),
    )(seed_arr, q_b, k_b, v_b)


if __name__ == "__main__":
    # Small shapes consistent with the module: (B, S_q, D) query, (B, S_k, D) key/value,
    # scale_factor = arange(S_k) (broadcasts over the key axis of qk, like the torch spec).
    B, S_q, S_k, D = 2, 8, 8, 32
    root = jax.random.PRNGKey(0)
    kq, kk, kv = jax.random.split(root, 3)
    query = jax.random.normal(kq, (B, S_q, D), dtype=jnp.float32)
    key = jax.random.normal(kk, (B, S_k, D), dtype=jnp.float32)
    value = jax.random.normal(kv, (B, S_k, D), dtype=jnp.float32)
    scale_factor = jnp.arange(0, S_k, 1, dtype=jnp.float32)

    # Deterministic correctness check with dropout disabled.
    out = jax.block_until_ready(
        sdpa_pallas(query, key, value, scale_factor, dropout_p=0.0))

    # Reference with the same bf16 quantization of the matmul operands (the kernel's
    # accuracy budget is bf16 MXU operands + approx reciprocal in the epilogue).
    q_b = query.astype(jnp.bfloat16)
    k_b = (key * scale_factor[None, :, None]).astype(jnp.bfloat16)
    v_b = value.astype(jnp.bfloat16)
    s_ref = jnp.einsum("bqd,bkd->bqk", q_b, k_b, preferred_element_type=jnp.float32)
    p_ref = jax.nn.softmax(s_ref, axis=-1)
    ref = jnp.einsum("bqk,bkd->bqd", p_ref.astype(jnp.bfloat16), v_b,
                     preferred_element_type=jnp.float32)
    max_err = float(jnp.max(jnp.abs(out - ref)))
    assert jnp.allclose(out, ref, atol=2e-2, rtol=2e-2), max_err

    # Loose sanity check against the pure-f32 module semantics.
    qk = jnp.einsum("bqd,bkd->bqk", query, key) * scale_factor
    ref_f32 = jnp.einsum("bqk,bkd->bqd", jax.nn.softmax(qk, axis=-1), value)
    assert jnp.allclose(out, ref_f32, atol=2.5e-1, rtol=2.5e-1), \
        float(jnp.max(jnp.abs(out - ref_f32)))

    # Exercise the dropout path once (forward-only stochastic path; sanity check only).
    out_d = jax.block_until_ready(
        sdpa_pallas(query, key, value, scale_factor, dropout_p=0.5, seed=123))
    assert out_d.shape == (B, S_q, D) and bool(jnp.isfinite(out_d).all())

    print("KERNEL_OK")
</pallas_src>

<mosaic_0001>
module attributes {stable_mosaic.version = 11 : i64} {
  func.func @_flash_sdpa_kernel(%arg0: i32, %arg1: i32, %arg2: i32, %arg3: memref<1xi32, #tpu.memory_space<smem>>, %arg4: memref<2x8x32xbf16, #tpu.memory_space<vmem>>, %arg5: memref<2x8x32xbf16, #tpu.memory_space<vmem>>, %arg6: memref<2x8x32xbf16, #tpu.memory_space<vmem>>, %arg7: memref<2x8x32xf32, #tpu.memory_space<vmem>>, %arg8: memref<2x8x1xf32, #tpu.memory_space<vmem>>, %arg9: memref<2x8x1xf32, #tpu.memory_space<vmem>>, %arg10: memref<2x8x32xf32, #tpu.memory_space<vmem>>) attributes {dimension_semantics = [#tpu.dimension_semantics<parallel>, #tpu.dimension_semantics<parallel>, #tpu.dimension_semantics<arbitrary>], iteration_bounds = array<i64: 1, 1, 1>, scalar_prefetch = 1 : i64, scratch_operands = 3 : i64, tpu.core_type = #tpu.core_type<tc>, window_params = [{transform_indices = @transform_0, window_bounds = array<i64: 2, 8, 32>}, {transform_indices = @transform_1, window_bounds = array<i64: 2, 8, 32>}, {transform_indices = @transform_2, window_bounds = array<i64: 2, 8, 32>}, {transform_indices = @transform_3, window_bounds = array<i64: 2, 8, 32>}]} {
    %c0_i32 = arith.constant 0 : i32
    %0 = arith.cmpi eq, %arg2, %c0_i32 : i32
    %1 = arith.extui %0 : i1 to i32
    %c0_i32_0 = arith.constant 0 : i32
    %2 = arith.cmpi ne, %1, %c0_i32_0 : i32
    scf.if %2 {
      %cst_32 = arith.constant 0xFF800000 : f32
      %33 = vector.broadcast %cst_32 : f32 to vector<2x8x1xf32>
      %c0_33 = arith.constant 0 : index
      %c0_34 = arith.constant 0 : index
      %c0_35 = arith.constant 0 : index
      %34 = vector.load %arg8[%c0_33, %c0_34, %c0_35] : memref<2x8x1xf32, #tpu.memory_space<vmem>>, vector<2x8x1xf32>
      tpu.vector_store %arg8[%c0_33, %c0_34, %c0_35], %33 {strides = array<i32>} : memref<2x8x1xf32, #tpu.memory_space<vmem>>, vector<2x8x1xf32>,
      %cst_36 = arith.constant 0.000000e+00 : f32
      %35 = vector.broadcast %cst_36 : f32 to vector<2x8x1xf32>
      %c0_37 = arith.constant 0 : index
      %c0_38 = arith.constant 0 : index
      %c0_39 = arith.constant 0 : index
      %36 = vector.load %arg9[%c0_37, %c0_38, %c0_39] : memref<2x8x1xf32, #tpu.memory_space<vmem>>, vector<2x8x1xf32>
      tpu.vector_store %arg9[%c0_37, %c0_38, %c0_39], %35 {strides = array<i32>} : memref<2x8x1xf32, #tpu.memory_space<vmem>>, vector<2x8x1xf32>,
      %cst_40 = arith.constant 0.000000e+00 : f32
      %37 = vector.broadcast %cst_40 : f32 to vector<2x8x32xf32>
      %c0_41 = arith.constant 0 : index
      %c0_42 = arith.constant 0 : index
      %c0_43 = arith.constant 0 : index
      %38 = vector.load %arg10[%c0_41, %c0_42, %c0_43] : memref<2x8x32xf32, #tpu.memory_space<vmem>>, vector<2x8x32xf32>
      tpu.vector_store %arg10[%c0_41, %c0_42, %c0_43], %37 {strides = array<i32>} : memref<2x8x32xf32, #tpu.memory_space<vmem>>, vector<2x8x32xf32>,
    } else {
    }
    %c0 = arith.constant 0 : index
    %c0_1 = arith.constant 0 : index
    %c0_2 = arith.constant 0 : index
    %3 = vector.load %arg4[%c0, %c0_1, %c0_2] : memref<2x8x32xbf16, #tpu.memory_space<vmem>>, vector<2x8x32xbf16>
    %c0_3 = arith.constant 0 : index
    %c0_4 = arith.constant 0 : index
    %c0_5 = arith.constant 0 : index
    %4 = vector.load %arg5[%c0_3, %c0_4, %c0_5] : memref<2x8x32xbf16, #tpu.memory_space<vmem>>, vector<2x8x32xbf16>
    %c0_6 = arith.constant 0 : index
    %c0_7 = arith.constant 0 : index
    %c0_8 = arith.constant 0 : index
    %5 = vector.load %arg6[%c0_6, %c0_7, %c0_8] : memref<2x8x32xbf16, #tpu.memory_space<vmem>>, vector<2x8x32xbf16>
    "tpu.trace_start"() <{level = 10 : i32, message = "bqd,bkd->bqk"}> : () -> ()
    %cst = arith.constant dense<0.000000e+00> : vector<2x8x8xf32>
    %6 = tpu.matmul %3, %4, %cst {dimension_numbers = #tpu.dot_dimension_numbers<[2], [2], [1], [1], [0, 0, 0, 1, 1, 1], [0], [0]>} : vector<2x8x32xbf16>, vector<2x8x32xbf16>, vector<2x8x8xf32> -> vector<2x8x8xf32>
    "tpu.trace_stop"() : () -> ()
    %c0_9 = arith.constant 0 : index
    %c0_10 = arith.constant 0 : index
    %c0_11 = arith.constant 0 : index
    %7 = vector.load %arg8[%c0_9, %c0_10, %c0_11] : memref<2x8x1xf32, #tpu.memory_space<vmem>>, vector<2x8x1xf32>
    %cst_12 = arith.constant dense<0xFF800000> : vector<2x8xf32>
    %8 = vector.multi_reduction <maximumf>, %6, %cst_12 [2] : vector<2x8x8xf32> to vector<2x8xf32>
    %9 = vector.shape_cast %8 : vector<2x8xf32> to vector<2x8x1xf32>
    %10 = arith.maximumf %7, %9 : vector<2x8x1xf32>
    %11 = arith.subf %7, %10 : vector<2x8x1xf32>
    %12 = math.exp %11 : vector<2x8x1xf32>
    %13 = vector.broadcast %10 : vector<2x8x1xf32> to vector<2x8x8xf32>
    %14 = arith.subf %6, %13 : vector<2x8x8xf32>
    %15 = math.exp %14 : vector<2x8x8xf32>
    %c0_13 = arith.constant 0 : index
    %c0_14 = arith.constant 0 : index
    %c0_15 = arith.constant 0 : index
    %16 = vector.load %arg9[%c0_13, %c0_14, %c0_15] : memref<2x8x1xf32, #tpu.memory_space<vmem>>, vector<2x8x1xf32>
    %17 = arith.mulf %12, %16 : vector<2x8x1xf32>
    %cst_16 = arith.constant dense<0.000000e+00> : vector<2x8xf32>
    %18 = vector.multi_reduction <add>, %15, %cst_16 [2] : vector<2x8x8xf32> to vector<2x8xf32>
    %19 = vector.shape_cast %18 : vector<2x8xf32> to vector<2x8x1xf32>
    %20 = arith.addf %17, %19 : vector<2x8x1xf32>
    %c0_17 = arith.constant 0 : index
    %c0_18 = arith.constant 0 : index
    %c0_19 = arith.constant 0 : index
    %21 = vector.load %arg9[%c0_17, %c0_18, %c0_19] : memref<2x8x1xf32, #tpu.memory_space<vmem>>, vector<2x8x1xf32>
    tpu.vector_store %arg9[%c0_17, %c0_18, %c0_19], %20 {strides = array<i32>} : memref<2x8x1xf32, #tpu.memory_space<vmem>>, vector<2x8x1xf32>,
    %c0_20 = arith.constant 0 : index
    %c0_21 = arith.constant 0 : index
    %c0_22 = arith.constant 0 : index
    %22 = vector.load %arg8[%c0_20, %c0_21, %c0_22] : memref<2x8x1xf32, #tpu.memory_space<vmem>>, vector<2x8x1xf32>
    tpu.vector_store %arg8[%c0_20, %c0_21, %c0_22], %10 {strides = array<i32>} : memref<2x8x1xf32, #tpu.memory_space<vmem>>, vector<2x8x1xf32>,
    %c0_23 = arith.constant 0 : index
    %c0_24 = arith.constant 0 : index
    %c0_25 = arith.constant 0 : index
    %23 = vector.load %arg10[%c0_23, %c0_24, %c0_25] : memref<2x8x32xf32, #tpu.memory_space<vmem>>, vector<2x8x32xf32>
    %24 = vector.broadcast %12 : vector<2x8x1xf32> to vector<2x8x32xf32>
    %25 = arith.mulf %24, %23 : vector<2x8x32xf32>
    %26 = arith.truncf %15 : vector<2x8x8xf32> to vector<2x8x8xbf16>
    "tpu.trace_start"() <{level = 10 : i32, message = "bqk,bkd->bqd"}> : () -> ()
    %cst_26 = arith.constant dense<0.000000e+00> : vector<2x8x32xf32>
    %27 = tpu.matmul %26, %5, %cst_26 {dimension_numbers = #tpu.dot_dimension_numbers<[2], [1], [1], [2], [0, 0, 0, 1, 1, 2], [0], [0]>} : vector<2x8x8xbf16>, vector<2x8x32xbf16>, vector<2x8x32xf32> -> vector<2x8x32xf32>
    "tpu.trace_stop"() : () -> ()
    %28 = arith.addf %25, %27 : vector<2x8x32xf32>
    %c0_27 = arith.constant 0 : index
    %c0_28 = arith.constant 0 : index
    %c0_29 = arith.constant 0 : index
    %29 = vector.load %arg10[%c0_27, %c0_28, %c0_29] : memref<2x8x32xf32, #tpu.memory_space<vmem>>, vector<2x8x32xf32>
    tpu.vector_store %arg10[%c0_27, %c0_28, %c0_29], %28 {strides = array<i32>} : memref<2x8x32xf32, #tpu.memory_space<vmem>>, vector<2x8x32xf32>,
    %c0_i32_30 = arith.constant 0 : i32
    %30 = arith.cmpi eq, %arg2, %c0_i32_30 : i32
    %31 = arith.extui %30 : i1 to i32
    %c0_i32_31 = arith.constant 0 : i32
    %32 = arith.cmpi ne, %31, %c0_i32_31 : i32
    scf.if %32 {
      %c0_32 = arith.constant 0 : index
      %c0_33 = arith.constant 0 : index
      %c0_34 = arith.constant 0 : index
      %33 = vector.load %arg10[%c0_32, %c0_33, %c0_34] : memref<2x8x32xf32, #tpu.memory_space<vmem>>, vector<2x8x32xf32>
      %c0_35 = arith.constant 0 : index
      %c0_36 = arith.constant 0 : index
      %c0_37 = arith.constant 0 : index
      %34 = vector.load %arg9[%c0_35, %c0_36, %c0_37] : memref<2x8x1xf32, #tpu.memory_space<vmem>>, vector<2x8x1xf32>
      %35 = tpu.reciprocal %34 {approx = true} : vector<2x8x1xf32> -> vector<2x8x1xf32>
      %36 = vector.broadcast %35 : vector<2x8x1xf32> to vector<2x8x32xf32>
      %37 = arith.mulf %33, %36 : vector<2x8x32xf32>
      %c0_38 = arith.constant 0 : index
      %c0_39 = arith.constant 0 : index
      %c0_40 = arith.constant 0 : index
      %38 = vector.load %arg7[%c0_38, %c0_39, %c0_40] : memref<2x8x32xf32, #tpu.memory_space<vmem>>, vector<2x8x32xf32>
      tpu.vector_store %arg7[%c0_38, %c0_39, %c0_40], %37 {strides = array<i32>} : memref<2x8x32xf32, #tpu.memory_space<vmem>>, vector<2x8x32xf32>,
    } else {
    }
    return
  }
  func.func @transform_0(%arg0: i32, %arg1: i32, %arg2: i32, %arg3: memref<1xi32, #tpu.memory_space<smem>>) -> (i32, i32, i32) {
    %c0_i32 = arith.constant 0 : i32
    %c0_i32_0 = arith.constant 0 : i32
    return %arg0, %arg1, %c0_i32 : i32, i32, i32
  }
  func.func @transform_1(%arg0: i32, %arg1: i32, %arg2: i32, %arg3: memref<1xi32, #tpu.memory_space<smem>>) -> (i32, i32, i32) {
    %c0_i32 = arith.constant 0 : i32
    %c0_i32_0 = arith.constant 0 : i32
    return %arg0, %arg2, %c0_i32 : i32, i32, i32
  }
  func.func @transform_2(%arg0: i32, %arg1: i32, %arg2: i32, %arg3: memref<1xi32, #tpu.memory_space<smem>>) -> (i32, i32, i32) {
    %c0_i32 = arith.constant 0 : i32
    %c0_i32_0 = arith.constant 0 : i32
    return %arg0, %arg2, %c0_i32 : i32, i32, i32
  }
  func.func @transform_3(%arg0: i32, %arg1: i32, %arg2: i32, %arg3: memref<1xi32, #tpu.memory_space<smem>>) -> (i32, i32, i32) {
    %c0_i32 = arith.constant 0 : i32
    %c0_i32_0 = arith.constant 0 : i32
    return %arg0, %arg1, %c0_i32 : i32, i32, i32
  }
}

</mosaic_0001>

<llo_original>
// kernel: tpu_custom_call.1
$region0: #{tpu_custom_call.1}
  #allocation0 [shape = 'u32[]', space=smem, size = 0x4, offset = 0x4, fixed_abs, tag = 'smem constant byte address 0x4 - core index']
  #allocation1 [shape = 'u32[144,128]{1,0:T(1,128)}', space=vmem, size = 0x12000, scoped, tag = 'internal scratch']
  #allocation2 [shape = 'f32[2,8,1]{2,1,0:T(8,128)}', space=vmem, size = 0x2000, scoped, tag = 'scratch operand']
  #allocation3 [shape = 'f32[2,8,1]{2,1,0:T(8,128)}', space=vmem, size = 0x2000, scoped, tag = 'scratch operand']
  #allocation4 [shape = 'f32[2,8,32]{2,1,0:T(8,128)}', space=vmem, size = 0x2000, scoped, tag = 'scratch operand']
  #allocation5 [shape = 's32[1]{0}', space=sflag, size = 0x4, scoped, tag = 'scoped memory for tpu_custom_call.1']
  #allocation6 [shape = 's32[1]{0:T(128)S(6)}', space=smem, size = 0x200, scoped, tag = 'prefetched SMEM operand 0']
  %s0 = inlined_call_operand.<no memory space> [shape: s32[1], index: 0, kind: input, shape index: {}]
  %s1 = inlined_call_operand.hbm [shape: bf16[2,8,32], index: 1, kind: input, shape index: {}]
  %s2 = inlined_call_operand.hbm [shape: bf16[2,8,32], index: 2, kind: input, shape index: {}]
  %s3 = inlined_call_operand.hbm [shape: bf16[2,8,32], index: 3, kind: input, shape index: {}]
  %s4 = inlined_call_operand.hbm [shape: f32[2,8,32], index: 4, kind: output, shape index: {}]
  %s5 = sld [smem:[#allocation0]]
  $region42: #{tpu_custom_call.1} parent=0
    _
  %s7 = ssub.s32 1, %s5
  %s8 = scalar_select 0, %s7, %s5
  %9 = sst [smem:[#allocation6]] %s0
  $region1: #{tpu_custom_call.1} parent=0
    #allocation7 [shape = 'u8[4096]{0}', space=vmem, size = 0x1000, scoped, tag = 'input window, operand 1, single buffered']
    #allocation8 [shape = 's32[1]{0}', space=sflag, size = 0x4, scoped, tag = 'scoped memory for tpu_custom_call.1']
    #allocation9 [shape = 's32[1]{0}', space=sflag, size = 0x4, scoped, tag = 'scoped memory for tpu_custom_call.1']
    #allocation10 [shape = 'u8[4096]{0}', space=vmem, size = 0x1000, scoped, tag = 'input window, operand 2, single buffered']
    #allocation11 [shape = 's32[1]{0}', space=sflag, size = 0x4, scoped, tag = 'scoped memory for tpu_custom_call.1']
    #allocation12 [shape = 'u8[4096]{0}', space=vmem, size = 0x1000, scoped, tag = 'input window, operand 3, single buffered']
    #allocation13 [shape = 'u8[8192]{0}', space=vmem, size = 0x2000, scoped, tag = 'output window, operand 0, single buffered']
    %10 = vsyncpa [#allocation8], 0
    %11 = vsyncpa [#allocation11], 0
    %12 = vsyncpa [#allocation9], 0
    // Predicated region
    $region2: #{tpu_custom_call.1} parent=1 // pred_check
      _
    $region3: #{tpu_custom_call.1} parent=1 // pred_check_branch
      %14 = sbr.rel (0) target = $region5
    $region4: #{tpu_custom_call.1} parent=1 // pred_region
      %s16 = ssub.s32 128, 128
      %17 = vsyncadd [#allocation8], %s16
      %s18 = sshll.u32 [#allocation7], 4
      %s19 = int_to_ptr.vmem [resolvable:$true] %s18
      %24 = dma.hbm_to_vmem [thread:$0]  %s1, 128, %s19, [#allocation8], 64, 64, 4
    $region5: #{tpu_custom_call.1} parent=1 // pred_fallthru
      _
    // Predicated region
    $region6: #{tpu_custom_call.1} parent=1 // pred_check
      _
    $region7: #{tpu_custom_call.1} parent=1 // pred_check_branch
      %26 = sbr.rel (0) target = $region9
    $region8: #{tpu_custom_call.1} parent=1 // pred_region
      %s28 = ssub.s32 128, 128
      %29 = vsyncadd [#allocation11], %s28
      %s30 = sshll.u32 [#allocation10], 4
      %s31 = int_to_ptr.vmem [resolvable:$true] %s30
      %36 = dma.hbm_to_vmem [thread:$0]  %s2, 128, %s31, [#allocation11], 64, 64, 4
    $region9: #{tpu_custom_call.1} parent=1 // pred_fallthru
      _
    // Predicated region
    $region10: #{tpu_custom_call.1} parent=1 // pred_check
      _
    $region11: #{tpu_custom_call.1} parent=1 // pred_check_branch
      %38 = sbr.rel (0) target = $region13
    $region12: #{tpu_custom_call.1} parent=1 // pred_region
      %s40 = ssub.s32 128, 128
      %41 = vsyncadd [#allocation11], %s40
      %s42 = sshll.u32 [#allocation12], 4
      %s43 = int_to_ptr.vmem [resolvable:$true] %s42
      %48 = dma.hbm_to_vmem [thread:$0]  %s3, 128, %s43, [#allocation11], 64, 64, 4
    $region13: #{tpu_custom_call.1} parent=1 // pred_fallthru
      _
    // Predicated region
    $region14: #{tpu_custom_call.1} parent=1 // pred_check
      _
    $region15: #{tpu_custom_call.1} parent=1 // pred_check_branch
      %50 = sbr.rel (0) target = $region17
    $region16: #{tpu_custom_call.1} parent=1 // pred_region
      %51 = dma.done [#allocation8], 128
    $region17: #{tpu_custom_call.1} parent=1 // pred_fallthru
      _
    // Predicated region
    $region18: #{tpu_custom_call.1} parent=1 // pred_check
      _
    $region19: #{tpu_custom_call.1} parent=1 // pred_check_branch
      %53 = sbr.rel (0) target = $region21
    $region20: #{tpu_custom_call.1} parent=1 // pred_region
      %54 = dma.done [#allocation11], 128
    $region21: #{tpu_custom_call.1} parent=1 // pred_fallthru
      _
    // Predicated region
    $region22: #{tpu_custom_call.1} parent=1 // pred_check
      _
    $region23: #{tpu_custom_call.1} parent=1 // pred_check_branch
      %56 = sbr.rel (0) target = $region25
    $region24: #{tpu_custom_call.1} parent=1 // pred_region
      %57 = dma.done [#allocation11], 128
    $region25: #{tpu_custom_call.1} parent=1 // pred_fallthru
      _
    %p59 = scmp.eq.s32.totalorder 0, 0
    // Predicated region
    $region26: #{tpu_custom_call.1} parent=1 // pred_check
      %p60 = pneg %p59
    $region27: #{tpu_custom_call.1} parent=1 // pred_check_branch
      %62 = sbr.rel (%p60) target = $region29
    $region28: #{tpu_custom_call.1} parent=1 // pred_region
      %vm63 = vcmask 7168
      %64 = vst.msk [vmem:[#allocation2] sm:$0xff] %vm63, -inf
      %65 = vst.msk [vmem:[#allocation2 + $0x8] sm:$0xff] %vm63, -inf
      %66 = vst.msk [vmem:[#allocation3] sm:$0xff] %vm63, 0.0
      %67 = vst.msk [vmem:[#allocation3 + $0x8] sm:$0xff] %vm63, 0.0
      %vm68 = vcmask 261120
      %69 = vst.msk [vmem:[#allocation4] sm:$0xff] %vm68, 0.0
      %70 = vst.msk [vmem:[#allocation4 + $0x8] sm:$0xff] %vm68, 0.0
    $region29: #{tpu_custom_call.1} parent=1 // pred_fallthru
      _
    %v71 = vld [vmem:[#allocation7] sm:$0xf]
    %v72 = vld [vmem:[#allocation7 + $0x4] sm:$0xf]
    %v73 = vld [vmem:[#allocation10] sm:$0xf]
    %v74 = vld [vmem:[#allocation10 + $0x4] sm:$0xf]
    %v75 = vld [vmem:[#allocation12] sm:$0xf]
    %v76 = vld [vmem:[#allocation12 + $0x4] sm:$0xf]
    %vm77 = vcmask 261120
    %v79 = vsel %vm77, %v71, 0
    %v82 = vsel %vm77, %v73, 0
    %84 = vmatprep.subr.bf16.mxu0 0
    %85 = vmatpush1.bf16.xpose.msra.mxu0 0
    %86 = vmatprep.subr.bf16.mxu0 0
    %87 = vmatpush1.bf16.xpose.msra.mxu0 0
    %88 = vmatprep.subr.bf16.mxu0 0
    %89 = vmatpush1.bf16.xpose.msra.mxu0 0
    %90 = vmatprep.subr.bf16.mxu0 0
    %91 = vmatpush1.bf16.xpose.msra.mxu0 0
    %92 = vmatprep.subr.bf16.mxu0 0
    %93 = vmatpush1.bf16.xpose.msra.mxu0 0
    %94 = vmatprep.subr.bf16.mxu0 0
    %95 = vmatpush1.bf16.xpose.msra.mxu0 0
    %96 = vmatprep.subr.bf16.mxu0 0
    %97 = vmatpush1.bf16.xpose.msra.mxu0 0
    %98 = vmatprep.subr.bf16.mxu0 0
    %99 = vmatpush1.bf16.xpose.msra.mxu0 %v82
    %100 = vmatprep.subr.bf16.mxu0 0
    %101 = vmatpush2.bf16.xpose.msra.mxu0 0
    %102 = vmatprep.subr.bf16.mxu0 0
    %103 = vmatpush2.bf16.xpose.msra.mxu0 0
    %104 = vmatprep.subr.bf16.mxu0 0
    %105 = vmatpush2.bf16.xpose.msra.mxu0 0
    %106 = vmatprep.subr.bf16.mxu0 0
    %107 = vmatpush2.bf16.xpose.msra.mxu0 0
    %108 = vmatprep.subr.bf16.mxu0 0
    %109 = vmatpush2.bf16.xpose.msra.mxu0 0
    %110 = vmatprep.subr.bf16.mxu0 0
    %111 = vmatpush2.bf16.xpose.msra.mxu0 0
    %112 = vmatprep.subr.bf16.mxu0 0
    %113 = vmatpush2.bf16.xpose.msra.mxu0 0
    %114 = vmatprep.subr.bf16.mxu0 0
    %115 = vmatpush2.bf16.xpose.msra.mxu0 0
    %116 = vmatprep.mubr.bf16.mxu0 0
    %117 = vmatmul.mubr.bf16.gmra.mxu0 %v79
    %v118 = vpop.f32.mrf.mxu0
    %v119 = vadd.f32 0.0, %v118
    %v120 = vpop.f32.mrf.mxu0
    %v121 = vpop.f32.mrf.mxu0
    %v122 = vpop.f32.mrf.mxu0
    %123 = vdwg.mxu0
    %v125 = vsel %vm77, %v72, 0
    %v128 = vsel %vm77, %v74, 0
    %130 = vmatprep.subr.bf16.mxu0 0
    %131 = vmatpush1.bf16.xpose.msra.mxu0 0
    %132 = vmatprep.subr.bf16.mxu0 0
    %133 = vmatpush1.bf16.xpose.msra.mxu0 0
    %134 = vmatprep.subr.bf16.mxu0 0
    %135 = vmatpush1.bf16.xpose.msra.mxu0 0
    %136 = vmatprep.subr.bf16.mxu0 0
    %137 = vmatpush1.bf16.xpose.msra.mxu0 0
    %138 = vmatprep.subr.bf16.mxu0 0
    %139 = vmatpush1.bf16.xpose.msra.mxu0 0
    %140 = vmatprep.subr.bf16.mxu0 0
    %141 = vmatpush1.bf16.xpose.msra.mxu0 0
    %142 = vmatprep.subr.bf16.mxu0 0
    %143 = vmatpush1.bf16.xpose.msra.mxu0 0
    %144 = vmatprep.subr.bf16.mxu0 0
    %145 = vmatpush1.bf16.xpose.msra.mxu0 %v128
    %146 = vmatprep.subr.bf16.mxu0 0
    %147 = vmatpush2.bf16.xpose.msra.mxu0 0
    %148 = vmatprep.subr.bf16.mxu0 0
    %149 = vmatpush2.bf16.xpose.msra.mxu0 0
    %150 = vmatprep.subr.bf16.mxu0 0
    %151 = vmatpush2.bf16.xpose.msra.mxu0 0
    %152 = vmatprep.subr.bf16.mxu0 0
    %153 = vmatpush2.bf16.xpose.msra.mxu0 0
    %154 = vmatprep.subr.bf16.mxu0 0
    %155 = vmatpush2.bf16.xpose.msra.mxu0 0
    %156 = vmatprep.subr.bf16.mxu0 0
    %157 = vmatpush2.bf16.xpose.msra.mxu0 0
    %158 = vmatprep.subr.bf16.mxu0 0
    %159 = vmatpush2.bf16.xpose.msra.mxu0 0
    %160 = vmatprep.subr.bf16.mxu0 0
    %161 = vmatpush2.bf16.xpose.msra.mxu0 0
    %162 = vmatprep.mubr.bf16.mxu0 0
    %163 = vmatmul.mubr.bf16.gmra.mxu0 %v125
    %v164 = vpop.f32.mrf.mxu0
    %v165 = vadd.f32 0.0, %v164
    %v166 = vpop.f32.mrf.mxu0
    %v167 = vpop.f32.mrf.mxu0
    %v168 = vpop.f32.mrf.mxu0
    %169 = vdwg.mxu0
    %v170 = vld [vmem:[#allocation2] sm:$0xff]
    %v171 = vld [vmem:[#allocation2 + $0x8] sm:$0xff]
    %vm172 = vcmask 64512
    %v173 = vsel %vm172, %v119, -inf
    %174 = vmax.xlane.f32.xlu0 %v173
    %v175 = vpop.xlane.xlu0 %174
    %v176 = vsel %vm172, %v165, -inf
    %177 = vmax.xlane.f32.xlu0 %v176
    %v178 = vpop.xlane.xlu0 %177
    %v179 = vmax.f32 %v170, %v175
    %v180 = vmax.f32 %v171, %v178
    %v181 = vsub.f32 %v170, %v179
    %v182 = vsub.f32 %v171, %v180
    %v183 = vmul.f32 %v181, 1.442695
    %v184 = vpow.pop %v183
    %v185 = vmul.f32 %v182, 1.442695
    %v186 = vpow.pop %v185
    %188 = vset.pattern.permute.xlu0 0
    %189 = vperm.xlu0 %188, %v179
    %v190 = vpop.permute.xlu0 %189
    %193 = vset.pattern.permute.xlu0 0
    %194 = vperm.xlu0 %193, %v180
    %v195 = vpop.permute.xlu0 %194
    %v197 = vsub.f32 %v119, %v190
    %v198 = vsub.f32 %v165, %v195
    %v199 = vmul.f32 %v197, 1.442695
    %v200 = vpow.pop %v199
    %v201 = vmul.f32 %v198, 1.442695
    %v202 = vpow.pop %v201
    %v203 = vld [vmem:[#allocation3] sm:$0xff]
    %v204 = vld [vmem:[#allocation3 + $0x8] sm:$0xff]
    %v205 = vmul.f32 %v184, %v203
    %v206 = vmul.f32 %v186, %v204
    %v207 = vsel %vm172, %v200, 0.0
    %208 = vadd.xlane.f32.xlu0 %v207
    %v209 = vpop.xlane.xlu0 %208
    %v210 = vsel %vm172, %v202, 0.0
    %211 = vadd.xlane.f32.xlu0 %v210
    %v212 = vpop.xlane.xlu0 %211
    %v213 = vadd.f32 %v205, %v209
    %v214 = vadd.f32 %v206, %v212
    %vm215 = vcmask 7168
    %216 = vst.msk [vmem:[#allocation3] sm:$0xff] %vm215, %v213
    %217 = vst.msk [vmem:[#allocation3 + $0x8] sm:$0xff] %vm215, %v214
    %218 = vst.msk [vmem:[#allocation2] sm:$0xff] %vm215, %v179
    %219 = vst.msk [vmem:[#allocation2 + $0x8] sm:$0xff] %vm215, %v180
    %v220 = vld [vmem:[#allocation4] sm:$0xff]
    %v221 = vld [vmem:[#allocation4 + $0x8] sm:$0xff]
    %223 = vset.pattern.permute.xlu0 0
    %224 = vperm.xlu0 %223, %v184
    %v225 = vpop.permute.xlu0 %224
    %228 = vset.pattern.permute.xlu0 0
    %229 = vperm.xlu0 %228, %v186
    %v230 = vpop.permute.xlu0 %229
    %v232 = vmul.f32 %v225, %v220
    %v233 = vmul.f32 %v230, %v221
    %v234 = vpack.c.bf16 %v200, %v200
    %v235 = vpack.c.bf16 %v202, %v202
    %v237 = vsel %vm172, %v234, 0
    %vm239 = vcmask 1043456
    %v241 = vsel %vm239, %v75, 0
    %243 = vmatprep.subr.bf16.mxu0 0
    %244 = vmatpush1.bf16.msra.mxu0 0
    %245 = vmatprep.subr.bf16.mxu0 0
    %246 = vmatpush1.bf16.msra.mxu0 0
    %247 = vmatprep.subr.bf16.mxu0 0
    %248 = vmatpush1.bf16.msra.mxu0 0
    %249 = vmatprep.subr.bf16.mxu0 0
    %250 = vmatpush1.bf16.msra.mxu0 0
    %251 = vmatprep.subr.bf16.mxu0 0
    %252 = vmatpush1.bf16.msra.mxu0 0
    %253 = vmatprep.subr.bf16.mxu0 0
    %254 = vmatpush1.bf16.msra.mxu0 0
    %255 = vmatprep.subr.bf16.mxu0 0
    %256 = vmatpush1.bf16.msra.mxu0 0
    %257 = vmatprep.subr.bf16.mxu0 0
    %258 = vmatpush1.bf16.msra.mxu0 %v241
    %259 = vmatprep.subr.bf16.mxu0 0
    %260 = vmatpush2.bf16.msra.mxu0 0
    %261 = vmatprep.subr.bf16.mxu0 0
    %262 = vmatpush2.bf16.msra.mxu0 0
    %263 = vmatprep.subr.bf16.mxu0 0
    %264 = vmatpush2.bf16.msra.mxu0 0
    %265 = vmatprep.subr.bf16.mxu0 0
    %266 = vmatpush2.bf16.msra.mxu0 0
    %267 = vmatprep.subr.bf16.mxu0 0
    %268 = vmatpush2.bf16.msra.mxu0 0
    %269 = vmatprep.subr.bf16.mxu0 0
    %270 = vmatpush2.bf16.msra.mxu0 0
    %271 = vmatprep.subr.bf16.mxu0 0
    %272 = vmatpush2.bf16.msra.mxu0 0
    %273 = vmatprep.subr.bf16.mxu0 0
    %274 = vmatpush2.bf16.msra.mxu0 0
    %275 = vmatprep.mubr.bf16.mxu0 0
    %276 = vmatmul.mubr.bf16.gmra.mxu0 %v237
    %v277 = vpop.f32.mrf.mxu0
    %v278 = vadd.f32 0.0, %v277
    %v279 = vpop.f32.mrf.mxu0
    %v280 = vpop.f32.mrf.mxu0
    %v281 = vpop.f32.mrf.mxu0
    %282 = vdwg.mxu0
    %v284 = vsel %vm172, %v235, 0
    %v287 = vsel %vm239, %v76, 0
    %289 = vmatprep.subr.bf16.mxu0 0
    %290 = vmatpush1.bf16.msra.mxu0 0
    %291 = vmatprep.subr.bf16.mxu0 0
    %292 = vmatpush1.bf16.msra.mxu0 0
    %293 = vmatprep.subr.bf16.mxu0 0
    %294 = vmatpush1.bf16.msra.mxu0 0
    %295 = vmatprep.subr.bf16.mxu0 0
    %296 = vmatpush1.bf16.msra.mxu0 0
    %297 = vmatprep.subr.bf16.mxu0 0
    %298 = vmatpush1.bf16.msra.mxu0 0
    %299 = vmatprep.subr.bf16.mxu0 0
    %300 = vmatpush1.bf16.msra.mxu0 0
    %301 = vmatprep.subr.bf16.mxu0 0
    %302 = vmatpush1.bf16.msra.mxu0 0
    %303 = vmatprep.subr.bf16.mxu0 0
    %304 = vmatpush1.bf16.msra.mxu0 %v287
    %305 = vmatprep.subr.bf16.mxu0 0
    %306 = vmatpush2.bf16.msra.mxu0 0
    %307 = vmatprep.subr.bf16.mxu0 0
    %308 = vmatpush2.bf16.msra.mxu0 0
    %309 = vmatprep.subr.bf16.mxu0 0
    %310 = vmatpush2.bf16.msra.mxu0 0
    %311 = vmatprep.subr.bf16.mxu0 0
    %312 = vmatpush2.bf16.msra.mxu0 0
    %313 = vmatprep.subr.bf16.mxu0 0
    %314 = vmatpush2.bf16.msra.mxu0 0
    %315 = vmatprep.subr.bf16.mxu0 0
    %316 = vmatpush2.bf16.msra.mxu0 0
    %317 = vmatprep.subr.bf16.mxu0 0
    %318 = vmatpush2.bf16.msra.mxu0 0
    %319 = vmatprep.subr.bf16.mxu0 0
    %320 = vmatpush2.bf16.msra.mxu0 0
    %321 = vmatprep.mubr.bf16.mxu0 0
    %322 = vmatmul.mubr.bf16.gmra.mxu0 %v284
    %v323 = vpop.f32.mrf.mxu0
    %v324 = vadd.f32 0.0, %v323
    %v325 = vpop.f32.mrf.mxu0
    %v326 = vpop.f32.mrf.mxu0
    %v327 = vpop.f32.mrf.mxu0
    %328 = vdwg.mxu0
    %v329 = vadd.f32 %v232, %v278
    %v330 = vadd.f32 %v233, %v324
    %331 = vst.msk [vmem:[#allocation4] sm:$0xff] %vm77, %v329
    %332 = vst.msk [vmem:[#allocation4 + $0x8] sm:$0xff] %vm77, %v330
    // Predicated region
    $region30: #{tpu_custom_call.1} parent=1 // pred_check
      %p333 = pneg %p59
    $region31: #{tpu_custom_call.1} parent=1 // pred_check_branch
      %335 = sbr.rel (%p333) target = $region33
    $region32: #{tpu_custom_call.1} parent=1 // pred_region
      %v336 = vld [vmem:[#allocation4] sm:$0xff]
      %v337 = vld [vmem:[#allocation4 + $0x8] sm:$0xff]
      %v338 = vld [vmem:[#allocation3] sm:$0xff]
      %v339 = vld [vmem:[#allocation3 + $0x8] sm:$0xff]
      %v340 = vrcp.pop %v338
      %v341 = vrcp.pop %v339
      %343 = vset.pattern.permute.xlu0 0
      %344 = vperm.xlu0 %343, %v340
      %v345 = vpop.permute.xlu0 %344
      %348 = vset.pattern.permute.xlu0 0
      %349 = vperm.xlu0 %348, %v341
      %v350 = vpop.permute.xlu0 %349
      %v352 = vmul.f32 %v336, %v345
      %v353 = vmul.f32 %v337, %v350
      %354 = vst.msk [vmem:[#allocation13] sm:$0xff] %vm77, %v352
      %355 = vst.msk [vmem:[#allocation13 + $0x8] sm:$0xff] %vm77, %v353
    $region33: #{tpu_custom_call.1} parent=1 // pred_fallthru
      _
    // Predicated region
    $region34: #{tpu_custom_call.1} parent=1 // pred_check
      _
    $region35: #{tpu_custom_call.1} parent=1 // pred_check_branch
      %357 = sbr.rel (0) target = $region37
    $region36: #{tpu_custom_call.1} parent=1 // pred_region
      %s359 = ssub.s32 256, 256
      %360 = vsyncadd [#allocation9], %s359
      %s361 = sshll.u32 [#allocation13], 4
      %s362 = int_to_ptr.vmem [resolvable:$true] %s361
      %367 = dma.vmem_to_hbm [thread:$0]  %s362, 256, %s4, [#allocation9], 128, 128, 8
    $region37: #{tpu_custom_call.1} parent=1 // pred_fallthru
      _
    // Predicated region
    $region38: #{tpu_custom_call.1} parent=1 // pred_check
      _
    $region39: #{tpu_custom_call.1} parent=1 // pred_check_branch
      %369 = sbr.rel (0) target = $region41
    $region40: #{tpu_custom_call.1} parent=1 // pred_region
      %370 = dma.done [#allocation9], 256
    $region41: #{tpu_custom_call.1} parent=1 // pred_fallthru
      _
    %371 = vsyncpa [#allocation8], 1
    %372 = vsyncpa [#allocation11], 1
    %373 = vsyncpa [#allocation9], 1

</llo_original>
